<compile_context>
chip_gen: v7x
topology: tpu7x:2x2x1
jax: 0.10.0
libtpu: 0.0.40
codegen_flags: <defaults>
</compile_context>

<pallas_src>
import numpy as np

import jax
import jax.numpy as jnp
from jax import lax
from jax.experimental import pallas as pl
from jax.experimental.pallas import tpu as pltpu


def _round_up(x, m):
    return ((x + m - 1) // m) * m


def _comp_layer_kernel(tile_off_ref,                  # scalar-prefetch: per-block edge-tile offsets (SMEM)
                       comp_ref, norm_ref, inm_ref,   # per-edge-tile streams (VMEM)
                       dst_ref, w_ref,                # per-tile local dst ids / resident stacked weight
                       o_ref):                        # [tN, Hp] output block == accumulator
    b = pl.program_id(0)                  # destination-node block
    t = pl.program_id(1)                  # edge tile within the block
    tn = o_ref.shape[0]
    te = comp_ref.shape[0]

    # ---- init the per-block accumulator (output block stays VMEM-resident across t) ----
    @pl.when(t == 0)
    def _init():
        o_ref[...] = jnp.zeros_like(o_ref)

    # number of real edge tiles owned by this node block (padding edges carry norm == 0)
    n_tiles_b = tile_off_ref[b + 1] - tile_off_ref[b]

    @pl.when(t < n_tiles_b)
    def _accumulate():
        comp = comp_ref[...].astype(jnp.float32)                       # [tE, Hp]
        norm = norm_ref[...]                                           # [tE, 1] edge-softmax weight
        s_in = norm * inm_ref[...]                                     # in-edges  -> w_o
        s_out = norm - s_in                                            # out-edges -> w_i
        # Fold softmax norm + in/out masks into the LHS; one [tE,2Hp]x[2Hp,Hp] MXU matmul.
        lhs = jnp.concatenate([s_out * comp, s_in * comp], axis=1).astype(jnp.bfloat16)
        comp_w = jnp.dot(lhs, w_ref[...], preferred_element_type=jnp.float32)   # [tE, Hp]
        # Vectorized scatter over dst: one-hot [tN, tE] (exact 0/1) times comp_w on the MXU.
        node_iota = lax.broadcasted_iota(jnp.int32, (tn, te), 0)
        onehot_t = (dst_ref[0] == node_iota).astype(jnp.bfloat16)      # [tN, tE]
        o_ref[...] += jnp.dot(onehot_t, comp_w.astype(jnp.bfloat16),
                              preferred_element_type=jnp.float32)

    # ---- finalize on the grid-static last inner step ----
    @pl.when(t == pl.num_programs(1) - 1)
    def _finalize():
        # TODO(synk): BatchNorm1d branch (cfg.bn=True) not implemented; target config uses bn=None.
        o_ref[...] = jnp.tanh(o_ref[...])


def comp_layer_forward(ent_emb, rel_emb, src, dst, rel_id, in_mask, w_i, w_o,
                       *, node_tile=256, edge_tile=512):
    """CompLayer.forward (comp_op='add', bn=None).  self.neigh_w is unused in forward."""
    N, H = ent_emb.shape
    E = int(src.shape[0])
    f32 = jnp.float32
    Hp = _round_up(H, 128)                    # lane-dense feature dim
    tE = int(edge_tile)                       # edges per tile        (multiple of 8)
    tN = int(node_tile)                       # dst nodes per block   (multiple of 8)
    assert tE % 8 == 0 and tN % 8 == 0
    Nb = -(-N // tN)                          # node blocks

    # ---- composition + edge softmax in the wrapper (O(E*H) gathers / O(E) segment ops) ----
    # TODO(synk): at production scale, gather ent/rel rows in-kernel (pl.Element / manual DMA
    # gather) to avoid materializing the [E, Hp] comp stream in HBM twice.
    comp = (ent_emb[src] + rel_emb[rel_id]).astype(f32)                # fn.u_add_e
    logits = jnp.sum(comp * ent_emb[dst].astype(f32), axis=-1)         # fn.e_dot_v
    gmax = jax.ops.segment_max(logits, dst, num_segments=N)
    p = jnp.exp(logits - gmax[dst])
    gsum = jax.ops.segment_sum(p, dst, num_segments=N)
    norm = p / gsum[dst]                                               # dgl.ops.edge_softmax

    # ---- sort edges by destination node, group into node blocks, pad each block to tiles ----
    # (host-side numpy: grid sizes / tile offsets must be static)
    dst_h = np.asarray(jax.device_get(dst)).astype(np.int64)
    order = np.argsort(dst_h, kind="stable")
    dst_sorted = dst_h[order]
    blk = dst_sorted // tN                                             # node block of each sorted edge
    counts = np.bincount(blk, minlength=Nb)                            # edges per node block
    padded = np.maximum(-(-counts // tE), 1) * tE                      # per-block edge slots (>= 1 tile)
    tiles_per_block = padded // tE
    tile_off = np.concatenate([[0], np.cumsum(tiles_per_block)]).astype(np.int32)   # [Nb + 1]
    max_tiles = int(tiles_per_block.max())
    Ep = int(padded.sum())
    n_tiles_total = Ep // tE

    blk_slot_start = np.concatenate([[0], np.cumsum(padded)])[:-1]     # first padded slot per block
    blk_edge_start = np.concatenate([[0], np.cumsum(counts)])[:-1]     # first sorted edge per block
    slot = blk_slot_start[blk] + (np.arange(E) - blk_edge_start[blk])  # padded slot of each sorted edge

    slot_edge = np.full((Ep,), E, dtype=np.int32)                      # E == dummy-edge sentinel row
    slot_edge[slot] = order
    dst_local = np.zeros((Ep,), dtype=np.int32)
    dst_local[slot] = (dst_sorted - blk * tN).astype(np.int32)         # node index within its block

    # ---- build kernel operands (dummy edge slots get comp = 0 and norm = 0) ----
    slot_edge_d = jnp.asarray(slot_edge)
    comp_ext = jnp.concatenate([comp, jnp.zeros((1, H), f32)], axis=0)
    norm_ext = jnp.concatenate([norm, jnp.zeros((1,), f32)], axis=0)
    inm_ext = jnp.concatenate([in_mask.astype(f32), jnp.zeros((1,), f32)], axis=0)

    comp_p = jnp.pad(comp_ext[slot_edge_d], ((0, 0), (0, Hp - H))).astype(jnp.bfloat16)  # [Ep, Hp]
    norm_p = norm_ext[slot_edge_d][:, None]                                              # [Ep, 1]
    inm_p = inm_ext[slot_edge_d][:, None]                                                # [Ep, 1]
    dst_p = jnp.asarray(dst_local).reshape(n_tiles_total, 1, tE)                         # [T, 1, tE]

    # stacked, zero-padded weight [[w_i], [w_o]] : [2*Hp, Hp]  (out-edges -> w_i, in-edges -> w_o)
    pad_h = Hp - H
    w_stack = jnp.concatenate(
        [jnp.pad(w_i.astype(f32), ((0, pad_h), (0, pad_h))),
         jnp.pad(w_o.astype(f32), ((0, pad_h), (0, pad_h)))], axis=0).astype(jnp.bfloat16)

    tile_off_d = jnp.asarray(tile_off)

    def edge_tile_idx(b, t, off):
        # clamp into this block's tile range; clamped (repeated) steps are skipped in-kernel
        return off[b] + jnp.minimum(t, off[b + 1] - off[b] - 1)

    out = pl.pallas_call(
        _comp_layer_kernel,
        out_shape=jax.ShapeDtypeStruct((Nb * tN, Hp), f32),
        grid_spec=pltpu.PrefetchScalarGridSpec(
            num_scalar_prefetch=1,                          # per-block tile offsets -> SMEM
            grid=(Nb, max_tiles),
            in_specs=[
                pl.BlockSpec((tE, Hp), lambda b, t, off: (edge_tile_idx(b, t, off), 0)),     # comp tile
                pl.BlockSpec((tE, 1), lambda b, t, off: (edge_tile_idx(b, t, off), 0)),      # norm tile
                pl.BlockSpec((tE, 1), lambda b, t, off: (edge_tile_idx(b, t, off), 0)),      # in-mask tile
                pl.BlockSpec((1, 1, tE), lambda b, t, off: (edge_tile_idx(b, t, off), 0, 0)),  # dst ids (lane-dense)
                pl.BlockSpec((2 * Hp, Hp), lambda b, t, off: (0, 0)),                        # resident weight
            ],
            out_specs=pl.BlockSpec((tN, Hp), lambda b, t, off: (b, 0)),
        ),
        compiler_params=pltpu.CompilerParams(
            dimension_semantics=("parallel", "arbitrary"),   # dst-disjoint blocks; tiles accumulate
            vmem_limit_bytes=32 * 1024 * 1024,
        ),
    )(tile_off_d, comp_p, norm_p, inm_p, dst_p, w_stack)

    return out[:N, :H]


def reference_forward(ent_emb, rel_emb, src, dst, rel_id, in_mask, w_i, w_o):
    """Pure-JAX reference of the DGL forward pass (comp_op='add', bn=None)."""
    N = ent_emb.shape[0]
    comp = ent_emb[src] + rel_emb[rel_id]                              # u_add_e
    logits = jnp.sum(comp * ent_emb[dst], axis=-1)                     # e_dot_v
    gmax = jax.ops.segment_max(logits, dst, num_segments=N)
    p = jnp.exp(logits - gmax[dst])
    gsum = jax.ops.segment_sum(p, dst, num_segments=N)
    norm = p / gsum[dst]                                               # edge_softmax
    in_m = in_mask.astype(jnp.float32)[:, None]
    comp_new = (1.0 - in_m) * (comp @ w_i) + in_m * (comp @ w_o)       # in_out_calc
    comp_new = comp_new * norm[:, None]
    neigh = jax.ops.segment_sum(comp_new, dst, num_segments=N)         # copy_e + sum
    return jnp.tanh(neigh)


if __name__ == "__main__":
    key = jax.random.PRNGKey(0)
    N, E, H, n_rel = 16, 37, 32, 5                                     # small synthetic graph

    k_ent, k_rel, k_src, k_dst, k_rid, k_msk, k_wi, k_wo = jax.random.split(key, 8)
    ent_emb = jax.random.normal(k_ent, (N, H), dtype=jnp.float32)
    rel_emb = jax.random.normal(k_rel, (2 * n_rel, H), dtype=jnp.float32)
    src = jax.random.randint(k_src, (E,), 0, N, dtype=jnp.int32)
    dst = jax.random.randint(k_dst, (E,), 0, N, dtype=jnp.int32)
    rel_id = jax.random.randint(k_rid, (E,), 0, 2 * n_rel, dtype=jnp.int32)
    in_mask = jax.random.bernoulli(k_msk, 0.5, (E,))                   # in vs out edge split
    scale = 1.0 / jnp.sqrt(jnp.float32(H))                             # get_param-like init
    w_i = jax.random.normal(k_wi, (H, H), dtype=jnp.float32) * scale
    w_o = jax.random.normal(k_wo, (H, H), dtype=jnp.float32) * scale
    # note: self.neigh_w is defined in __init__ but unused in forward, so it is omitted.

    # small tiles so multiple node blocks / multiple edge tiles / clamped-tile paths are exercised
    out = comp_layer_forward(ent_emb, rel_emb, src, dst, rel_id, in_mask, w_i, w_o,
                             node_tile=8, edge_tile=8)
    out = jax.block_until_ready(out)

    ref = reference_forward(ent_emb, rel_emb, src, dst, rel_id, in_mask, w_i, w_o)
    assert out.shape == (N, H) and out.dtype == jnp.float32
    err = float(jnp.max(jnp.abs(out - ref)))
    # bf16 MXU operands with f32 accumulation -> compare with a bf16-appropriate tolerance
    assert jnp.allclose(out, ref, atol=3e-2, rtol=3e-2), f"mismatch vs reference (max abs err {err})"
    print("KERNEL_OK")
</pallas_src>

<mosaic_0001>
module attributes {stable_mosaic.version = 11 : i64} {
  func.func @_comp_layer_kernel(%arg0: i32, %arg1: i32, %arg2: memref<3xi32, #tpu.memory_space<smem>>, %arg3: memref<8x128xbf16, #tpu.memory_space<vmem>>, %arg4: memref<8x1xf32, #tpu.memory_space<vmem>>, %arg5: memref<8x1xf32, #tpu.memory_space<vmem>>, %arg6: memref<1x1x8xi32, #tpu.memory_space<vmem>>, %arg7: memref<256x128xbf16, #tpu.memory_space<vmem>>, %arg8: memref<8x128xf32, #tpu.memory_space<vmem>>) attributes {dimension_semantics = [#tpu.dimension_semantics<parallel>, #tpu.dimension_semantics<arbitrary>], iteration_bounds = array<i64: 2, 3>, scalar_prefetch = 1 : i64, scratch_operands = 0 : i64, tpu.core_type = #tpu.core_type<tc>, window_params = [{transform_indices = @transform_0, window_bounds = array<i64: 8, 128>}, {transform_indices = @transform_1, window_bounds = array<i64: 8, 1>}, {transform_indices = @transform_2, window_bounds = array<i64: 8, 1>}, {transform_indices = @transform_3, window_bounds = array<i64: 1, 1, 8>}, {pipeline_mode = #tpu.pipeline_mode<synchronous>, transform_indices = @transform_4, window_bounds = array<i64: 256, 128>}, {transform_indices = @transform_5, window_bounds = array<i64: 8, 128>}]} {
    %c0_i32 = arith.constant 0 : i32
    %0 = arith.cmpi eq, %arg1, %c0_i32 : i32
    %1 = arith.extui %0 : i1 to i32
    %c0_i32_0 = arith.constant 0 : i32
    %2 = arith.cmpi ne, %1, %c0_i32_0 : i32
    scf.if %2 {
      %cst = arith.constant 0.000000e+00 : f32
      %15 = vector.broadcast %cst : f32 to vector<8x128xf32>
      %c0 = arith.constant 0 : index
      %c0_3 = arith.constant 0 : index
      %16 = vector.load %arg8[%c0, %c0_3] : memref<8x128xf32, #tpu.memory_space<vmem>>, vector<8x128xf32>
      tpu.vector_store %arg8[%c0, %c0_3], %15 {strides = array<i32>} : memref<8x128xf32, #tpu.memory_space<vmem>>, vector<8x128xf32>,
    } else {
    }
    %c1_i32 = arith.constant 1 : i32
    %3 = arith.addi %arg0, %c1_i32 : i32
    %4 = arith.index_cast %3 : i32 to index
    %5 = memref.load %arg2[%4] : memref<3xi32, #tpu.memory_space<smem>>
    %6 = arith.index_cast %arg0 : i32 to index
    %7 = memref.load %arg2[%6] : memref<3xi32, #tpu.memory_space<smem>>
    %8 = arith.subi %5, %7 : i32
    %9 = arith.cmpi slt, %arg1, %8 : i32
    %10 = arith.extui %9 : i1 to i32
    %c0_i32_1 = arith.constant 0 : i32
    %11 = arith.cmpi ne, %10, %c0_i32_1 : i32
    scf.if %11 {
      %c0 = arith.constant 0 : index
      %c0_3 = arith.constant 0 : index
      %15 = vector.load %arg3[%c0, %c0_3] : memref<8x128xbf16, #tpu.memory_space<vmem>>, vector<8x128xbf16>
      %16 = arith.extf %15 : vector<8x128xbf16> to vector<8x128xf32>
      %c0_4 = arith.constant 0 : index
      %c0_5 = arith.constant 0 : index
      %17 = vector.load %arg4[%c0_4, %c0_5] : memref<8x1xf32, #tpu.memory_space<vmem>>, vector<8x1xf32>
      %c0_6 = arith.constant 0 : index
      %c0_7 = arith.constant 0 : index
      %18 = vector.load %arg5[%c0_6, %c0_7] : memref<8x1xf32, #tpu.memory_space<vmem>>, vector<8x1xf32>
      %19 = arith.mulf %17, %18 : vector<8x1xf32>
      %20 = arith.subf %17, %19 : vector<8x1xf32>
      %21 = vector.broadcast %20 : vector<8x1xf32> to vector<8x128xf32>
      %22 = arith.mulf %21, %16 : vector<8x128xf32>
      %23 = vector.broadcast %19 : vector<8x1xf32> to vector<8x128xf32>
      %24 = arith.mulf %23, %16 : vector<8x128xf32>
      %25 = tpu.concatenate %22, %24 in 1 : vector<8x128xf32>, vector<8x128xf32> -> vector<8x256xf32>
      %26 = arith.truncf %25 : vector<8x256xf32> to vector<8x256xbf16>
      %c0_8 = arith.constant 0 : index
      %c0_9 = arith.constant 0 : index
      %27 = vector.load %arg7[%c0_8, %c0_9] : memref<256x128xbf16, #tpu.memory_space<vmem>>, vector<256x128xbf16>
      %cst = arith.constant dense<0.000000e+00> : vector<8x128xf32>
      %28 = tpu.matmul %26, %27, %cst {dimension_numbers = #tpu.dot_dimension_numbers<[1], [0], [0], [1], [0, 0, 1, 1], [], []>} : vector<8x256xbf16>, vector<256x128xbf16>, vector<8x128xf32> -> vector<8x128xf32>
      %29 = tpu.iota {dimensions = array<i32: 0>} : vector<8x8xi32>
      %c0_10 = arith.constant 0 : index
      %c0_11 = arith.constant 0 : index
      %c0_12 = arith.constant 0 : index
      %30 = vector.load %arg6[%c0_10, %c0_11, %c0_12] : memref<1x1x8xi32, #tpu.memory_space<vmem>>, vector<1x1x8xi32>
      %31 = vector.shape_cast %30 : vector<1x1x8xi32> to vector<1x8xi32>
      %32 = vector.broadcast %31 : vector<1x8xi32> to vector<8x8xi32>
      %33 = arith.cmpi eq, %32, %29 : vector<8x8xi32>
      %34 = arith.extui %33 : vector<8x8xi1> to vector<8x8xi32>
      %35 = arith.sitofp %34 : vector<8x8xi32> to vector<8x8xf32>
      %36 = arith.truncf %35 : vector<8x8xf32> to vector<8x8xbf16>
      %c0_13 = arith.constant 0 : index
      %c0_14 = arith.constant 0 : index
      %37 = vector.load %arg8[%c0_13, %c0_14] : memref<8x128xf32, #tpu.memory_space<vmem>>, vector<8x128xf32>
      %38 = arith.truncf %28 : vector<8x128xf32> to vector<8x128xbf16>
      %cst_15 = arith.constant dense<0.000000e+00> : vector<8x128xf32>
      %39 = tpu.matmul %36, %38, %cst_15 {dimension_numbers = #tpu.dot_dimension_numbers<[1], [0], [0], [1], [0, 0, 1, 1], [], []>} : vector<8x8xbf16>, vector<8x128xbf16>, vector<8x128xf32> -> vector<8x128xf32>
      %40 = arith.addf %37, %39 : vector<8x128xf32>
      %c0_16 = arith.constant 0 : index
      %c0_17 = arith.constant 0 : index
      %41 = vector.load %arg8[%c0_16, %c0_17] : memref<8x128xf32, #tpu.memory_space<vmem>>, vector<8x128xf32>
      tpu.vector_store %arg8[%c0_16, %c0_17], %40 {strides = array<i32>} : memref<8x128xf32, #tpu.memory_space<vmem>>, vector<8x128xf32>,
    } else {
    }
    %c2_i32 = arith.constant 2 : i32
    %12 = arith.cmpi eq, %arg1, %c2_i32 : i32
    %13 = arith.extui %12 : i1 to i32
    %c0_i32_2 = arith.constant 0 : i32
    %14 = arith.cmpi ne, %13, %c0_i32_2 : i32
    scf.if %14 {
      %c0 = arith.constant 0 : index
      %c0_3 = arith.constant 0 : index
      %15 = vector.load %arg8[%c0, %c0_3] : memref<8x128xf32, #tpu.memory_space<vmem>>, vector<8x128xf32>
      %16 = math.tanh %15 : vector<8x128xf32>
      %c0_4 = arith.constant 0 : index
      %c0_5 = arith.constant 0 : index
      %17 = vector.load %arg8[%c0_4, %c0_5] : memref<8x128xf32, #tpu.memory_space<vmem>>, vector<8x128xf32>
      tpu.vector_store %arg8[%c0_4, %c0_5], %16 {strides = array<i32>} : memref<8x128xf32, #tpu.memory_space<vmem>>, vector<8x128xf32>,
    } else {
    }
    return
  }
  func.func @transform_0(%arg0: i32, %arg1: i32, %arg2: memref<3xi32, #tpu.memory_space<smem>>) -> (i32, i32) {
    %0 = arith.index_cast %arg0 : i32 to index
    %1 = memref.load %arg2[%0] : memref<3xi32, #tpu.memory_space<smem>>
    %c1_i32 = arith.constant 1 : i32
    %2 = arith.addi %arg0, %c1_i32 : i32
    %3 = arith.index_cast %2 : i32 to index
    %4 = memref.load %arg2[%3] : memref<3xi32, #tpu.memory_space<smem>>
    %5 = arith.index_cast %arg0 : i32 to index
    %6 = memref.load %arg2[%5] : memref<3xi32, #tpu.memory_space<smem>>
    %7 = arith.subi %4, %6 : i32
    %c1_i32_0 = arith.constant 1 : i32
    %8 = arith.subi %7, %c1_i32_0 : i32
    %9 = arith.minsi %arg1, %8 : i32
    %10 = arith.addi %1, %9 : i32
    %c0_i32 = arith.constant 0 : i32
    %c0_i32_1 = arith.constant 0 : i32
    return %10, %c0_i32 : i32, i32
  }
  func.func @transform_1(%arg0: i32, %arg1: i32, %arg2: memref<3xi32, #tpu.memory_space<smem>>) -> (i32, i32) {
    %0 = arith.index_cast %arg0 : i32 to index
    %1 = memref.load %arg2[%0] : memref<3xi32, #tpu.memory_space<smem>>
    %c1_i32 = arith.constant 1 : i32
    %2 = arith.addi %arg0, %c1_i32 : i32
    %3 = arith.index_cast %2 : i32 to index
    %4 = memref.load %arg2[%3] : memref<3xi32, #tpu.memory_space<smem>>
    %5 = arith.index_cast %arg0 : i32 to index
    %6 = memref.load %arg2[%5] : memref<3xi32, #tpu.memory_space<smem>>
    %7 = arith.subi %4, %6 : i32
    %c1_i32_0 = arith.constant 1 : i32
    %8 = arith.subi %7, %c1_i32_0 : i32
    %9 = arith.minsi %arg1, %8 : i32
    %10 = arith.addi %1, %9 : i32
    %c0_i32 = arith.constant 0 : i32
    %c0_i32_1 = arith.constant 0 : i32
    return %10, %c0_i32 : i32, i32
  }
  func.func @transform_2(%arg0: i32, %arg1: i32, %arg2: memref<3xi32, #tpu.memory_space<smem>>) -> (i32, i32) {
    %0 = arith.index_cast %arg0 : i32 to index
    %1 = memref.load %arg2[%0] : memref<3xi32, #tpu.memory_space<smem>>
    %c1_i32 = arith.constant 1 : i32
    %2 = arith.addi %arg0, %c1_i32 : i32
    %3 = arith.index_cast %2 : i32 to index
    %4 = memref.load %arg2[%3] : memref<3xi32, #tpu.memory_space<smem>>
    %5 = arith.index_cast %arg0 : i32 to index
    %6 = memref.load %arg2[%5] : memref<3xi32, #tpu.memory_space<smem>>
    %7 = arith.subi %4, %6 : i32
    %c1_i32_0 = arith.constant 1 : i32
    %8 = arith.subi %7, %c1_i32_0 : i32
    %9 = arith.minsi %arg1, %8 : i32
    %10 = arith.addi %1, %9 : i32
    %c0_i32 = arith.constant 0 : i32
    %c0_i32_1 = arith.constant 0 : i32
    return %10, %c0_i32 : i32, i32
  }
  func.func @transform_3(%arg0: i32, %arg1: i32, %arg2: memref<3xi32, #tpu.memory_space<smem>>) -> (i32, i32, i32) {
    %0 = arith.index_cast %arg0 : i32 to index
    %1 = memref.load %arg2[%0] : memref<3xi32, #tpu.memory_space<smem>>
    %c1_i32 = arith.constant 1 : i32
    %2 = arith.addi %arg0, %c1_i32 : i32
    %3 = arith.index_cast %2 : i32 to index
    %4 = memref.load %arg2[%3] : memref<3xi32, #tpu.memory_space<smem>>
    %5 = arith.index_cast %arg0 : i32 to index
    %6 = memref.load %arg2[%5] : memref<3xi32, #tpu.memory_space<smem>>
    %7 = arith.subi %4, %6 : i32
    %c1_i32_0 = arith.constant 1 : i32
    %8 = arith.subi %7, %c1_i32_0 : i32
    %9 = arith.minsi %arg1, %8 : i32
    %10 = arith.addi %1, %9 : i32
    %c0_i32 = arith.constant 0 : i32
    %c0_i32_1 = arith.constant 0 : i32
    %c0_i32_2 = arith.constant 0 : i32
    return %10, %c0_i32, %c0_i32_1 : i32, i32, i32
  }
  func.func @transform_4(%arg0: i32, %arg1: i32, %arg2: memref<3xi32, #tpu.memory_space<smem>>) -> (i32, i32) {
    %c0_i32 = arith.constant 0 : i32
    %c0_i32_0 = arith.constant 0 : i32
    %c0_i32_1 = arith.constant 0 : i32
    return %c0_i32, %c0_i32_0 : i32, i32
  }
  func.func @transform_5(%arg0: i32, %arg1: i32, %arg2: memref<3xi32, #tpu.memory_space<smem>>) -> (i32, i32) {
    %c0_i32 = arith.constant 0 : i32
    %c0_i32_0 = arith.constant 0 : i32
    return %arg0, %c0_i32 : i32, i32
  }
}

</mosaic_0001>

<llo_original>
// kernel: tpu_custom_call.1
$region0: #{tpu_custom_call.1}
  #allocation0 [shape = 'u32[]', space=smem, size = 0x4, offset = 0x4, fixed_abs, tag = 'smem constant byte address 0x4 - core index']
  #allocation1 [shape = 'u32[144,128]{1,0:T(1,128)}', space=vmem, size = 0x12000, scoped, tag = 'internal scratch']
  #allocation2 [shape = 's32[1]{0}', space=sflag, size = 0x4, scoped, tag = 'scoped memory for tpu_custom_call.1']
  #allocation3 [shape = 'u8[512]{0}', space=smem, size = 0x200, scoped, tag = 'prefetched SMEM operand 0']
  %s0 = inlined_call_operand.vmem [shape: s32[3], index: 0, kind: input, shape index: {}]
  %s1 = inlined_call_operand.vmem [shape: bf16[48,128], index: 1, kind: input, shape index: {}]
  %s2 = inlined_call_operand.vmem [shape: f32[48,1], index: 2, kind: input, shape index: {}]
  %s3 = inlined_call_operand.vmem [shape: f32[48,1], index: 3, kind: input, shape index: {}]
  %s4 = inlined_call_operand.vmem [shape: s32[6,1,8], index: 4, kind: input, shape index: {}]
  %s5 = inlined_call_operand.hbm [shape: bf16[256,128], index: 5, kind: input, shape index: {}]
  %s6 = inlined_call_operand.hbm [shape: f32[16,128], index: 6, kind: output, shape index: {}]
  %s7 = sld [smem:[#allocation0]]
  $region69: #{tpu_custom_call.1} parent=0
    _
  %s9 = ssub.s32 1, %s7
  %s10 = scalar_select 0, %s9, %s7
  %s11 = sshll.u32 %s0, 4
  %s12 = int_to_ptr.vmem [resolvable:$true] %s11
  %14 = dma.vmem_to_smem %s12, 16, [#allocation3], [#allocation2]
  %15 = dma.done [#allocation2], 16
  %16 = sfence
  $region1: #{tpu_custom_call.1} parent=0
    #allocation4 [shape = 'u8[65536]{0}', space=vmem, size = 0x10000, scoped, tag = 'input window, operand 5, single buffered']
    #allocation5 [shape = 's32[2]{0}', space=sflag, size = 0x8, scoped, tag = 'scoped memory for tpu_custom_call.1']
    #allocation6 [shape = 's32[2]{0}', space=sflag, size = 0x8, scoped, tag = 'scoped memory for tpu_custom_call.1']
    #allocation7 [shape = 'u8[8192]{0}', space=vmem, size = 0x2000, scoped, tag = 'output window, operand 0']
    %17 = vsyncpa [#allocation5], 0
    %18 = vsyncpa [#allocation6], 0
    %s19 = scalar_lea.sflag [#allocation6], 1
    %20 = vsyncpa %s19, 0
    loop: start=0, step=1, limit=8
    $region2: #{tpu_custom_call.1} parent=1 // loop_pre_header
      _
    $region3: #{tpu_custom_call.1} parent=1 // loop_header
      %s22 = sphi 0, %s26
      %p23 = scmp.ge.s32.totalorder %s22, 8
      %s29 = sphi 0, %s41
      %s30 = sphi 0, %s37
      %s31 = sphi 0, %s29
      %s32 = sphi 0, %s30
      %s33 = sphi 0, %s31
      %s34 = sphi 0, %s32
      %s60 = sphi 0, %s62
      %s63 = sphi 0, %s60
      %s64 = sphi 0, %s63
      %s80 = sphi 0, %s64
      %s102 = sphi 0, %s104
      %s105 = sphi 0, %s102
      %s106 = sphi 0, %s105
      %s122 = sphi 0, %s106
      %s144 = sphi 0, %s146
      %s147 = sphi 0, %s144
      %s148 = sphi 0, %s147
      %s164 = sphi 0, %s148
      %s186 = sphi 0, %s188
      %s189 = sphi 0, %s186
      %s190 = sphi 0, %s189
      %s206 = sphi 0, %s190
      %s210 = sphi 0, %s210
      %s212 = sphi 0, %s210
      %s213 = sphi 0, %s212
      %s227 = sphi 0, %s213
      %s233 = sphi 0, %s235
      %s236 = sphi 0, %s233
      %s237 = sphi 0, %s236
      %s253 = sphi 0, %s237
    $region4: #{tpu_custom_call.1} parent=1 // loop_header_branch
      %25 = sbr.rel (%p23) target = $region8
    $region5: #{tpu_custom_call.1} parent=1 // loop_body
      %s27 = ssub.s32 %s22, 1
      %s28 = ssub.s32 %s22, 2
      %s35 = sadd.s32 1, %s30
      %p36 = scmp.ge.s32.totalorder %s35, 3
      %s37 = scalar_select %p36, 0, %s35
      %s38 = sadd.s32 1, %s29
      %s39 = scalar_select %p36, %s38, %s29
      %p40 = scmp.ge.s32.totalorder %s39, 2
      %s41 = scalar_select %p40, 0, %s39
      %s42 = sld [smem:[#allocation3 + %s29]]
      %s43 = sadd.s32 %s29, 1
      %s44 = sld [smem:[#allocation3 + %s43]]
      %s45 = ssub.s32 %s44, %s42
      %s46 = ssub.s32 %s45, 1
      %p47 = scmp.lt.s32.totalorder %s30, %s46
      %s48 = scalar_select %p47, %s30, %s46
      %s49 = sadd.s32 %s42, %s48
      %s50 = sld [smem:[#allocation3 + %s41]]
      %s51 = sadd.s32 %s41, 1
      %s52 = sld [smem:[#allocation3 + %s51]]
      %s53 = ssub.s32 %s52, %s50
      %s54 = ssub.s32 %s53, 1
      %p55 = scmp.lt.s32.totalorder %s37, %s54
      %s56 = scalar_select %p55, %s37, %s54
      %s57 = sadd.s32 %s50, %s56
      %s58 = ssub.s32 %s49, %s57
      %p59 = scmp.eq.s32.totalorder %s58, 0
      %s61 = sadd.s32 %s60, 1
      %s62 = scalar_select %p59, %s60, %s61
      %p65 = pneg %p59
      %p66 = scmp.eq.s32.totalorder %s22, 5
      %p67 = por %p65, %p66
      %p68 = scmp.ne.s32.totalorder %s60, %s63
      %p69 = scmp.eq.s32.totalorder %s22, 0
      %p70 = por %p68, %p69
      %p71 = scmp.ne.s32.totalorder %s60, %s63
      %p72 = scmp.eq.s32.totalorder %s27, 5
      %p73 = por %p71, %p72
      %p74 = scmp.ne.s32.totalorder %s63, %s64
      %p75 = scmp.eq.s32.totalorder %s27, 0
      %p76 = por %p74, %p75
      %p77 = scmp.ne.s32.totalorder %s63, %s64
      %p78 = scmp.eq.s32.totalorder %s28, 5
      %p79 = por %p77, %p78
      %p81 = scmp.ne.s32.totalorder %s64, %s80
      %p82 = scmp.eq.s32.totalorder %s28, 0
      %p83 = por %p81, %p82
      %s84 = sld [smem:[#allocation3 + %s29]]
      %s85 = sadd.s32 %s29, 1
      %s86 = sld [smem:[#allocation3 + %s85]]
      %s87 = ssub.s32 %s86, %s84
      %s88 = ssub.s32 %s87, 1
      %p89 = scmp.lt.s32.totalorder %s30, %s88
      %s90 = scalar_select %p89, %s30, %s88
      %s91 = sadd.s32 %s84, %s90
      %s92 = sld [smem:[#allocation3 + %s41]]
      %s93 = sadd.s32 %s41, 1
      %s94 = sld [smem:[#allocation3 + %s93]]
      %s95 = ssub.s32 %s94, %s92
      %s96 = ssub.s32 %s95, 1
      %p97 = scmp.lt.s32.totalorder %s37, %s96
      %s98 = scalar_select %p97, %s37, %s96
      %s99 = sadd.s32 %s92, %s98
      %s100 = ssub.s32 %s91, %s99
      %p101 = scmp.eq.s32.totalorder %s100, 0
      %s103 = sadd.s32 %s102, 1
      %s104 = scalar_select %p101, %s102, %s103
      %p107 = pneg %p101
      %p108 = scmp.eq.s32.totalorder %s22, 5
      %p109 = por %p107, %p108
      %p110 = scmp.ne.s32.totalorder %s102, %s105
      %p111 = scmp.eq.s32.totalorder %s22, 0
      %p112 = por %p110, %p111
      %p113 = scmp.ne.s32.totalorder %s102, %s105
      %p114 = scmp.eq.s32.totalorder %s27, 5
      %p115 = por %p113, %p114
      %p116 = scmp.ne.s32.totalorder %s105, %s106
      %p117 = scmp.eq.s32.totalorder %s27, 0
      %p118 = por %p116, %p117
      %p119 = scmp.ne.s32.totalorder %s105, %s106
      %p120 = scmp.eq.s32.totalorder %s28, 5
      %p121 = por %p119, %p120
      %p123 = scmp.ne.s32.totalorder %s106, %s122
      %p124 = scmp.eq.s32.totalorder %s28, 0
      %p125 = por %p123, %p124
      %s126 = sld [smem:[#allocation3 + %s29]]
      %s127 = sadd.s32 %s29, 1
      %s128 = sld [smem:[#allocation3 + %s127]]
      %s129 = ssub.s32 %s128, %s126
      %s130 = ssub.s32 %s129, 1
      %p131 = scmp.lt.s32.totalorder %s30, %s130
      %s132 = scalar_select %p131, %s30, %s130
      %s133 = sadd.s32 %s126, %s132
      %s134 = sld [smem:[#allocation3 + %s41]]
      %s135 = sadd.s32 %s41, 1
      %s136 = sld [smem:[#allocation3 + %s135]]
      %s137 = ssub.s32 %s136, %s134
      %s138 = ssub.s32 %s137, 1
      %p139 = scmp.lt.s32.totalorder %s37, %s138
      %s140 = scalar_select %p139, %s37, %s138
      %s141 = sadd.s32 %s134, %s140
      %s142 = ssub.s32 %s133, %s141
      %p143 = scmp.eq.s32.totalorder %s142, 0
      %s145 = sadd.s32 %s144, 1
      %s146 = scalar_select %p143, %s144, %s145
      %p149 = pneg %p143
      %p150 = scmp.eq.s32.totalorder %s22, 5
      %p151 = por %p149, %p150
      %p152 = scmp.ne.s32.totalorder %s144, %s147
      %p153 = scmp.eq.s32.totalorder %s22, 0
      %p154 = por %p152, %p153
      %p155 = scmp.ne.s32.totalorder %s144, %s147
      %p156 = scmp.eq.s32.totalorder %s27, 5
      %p157 = por %p155, %p156
      %p158 = scmp.ne.s32.totalorder %s147, %s148
      %p159 = scmp.eq.s32.totalorder %s27, 0
      %p160 = por %p158, %p159
      %p161 = scmp.ne.s32.totalorder %s147, %s148
      %p162 = scmp.eq.s32.totalorder %s28, 5
      %p163 = por %p161, %p162
      %p165 = scmp.ne.s32.totalorder %s148, %s164
      %p166 = scmp.eq.s32.totalorder %s28, 0
      %p167 = por %p165, %p166
      %s168 = sld [smem:[#allocation3 + %s29]]
      %s169 = sadd.s32 %s29, 1
      %s170 = sld [smem:[#allocation3 + %s169]]
      %s171 = ssub.s32 %s170, %s168
      %s172 = ssub.s32 %s171, 1
      %p173 = scmp.lt.s32.totalorder %s30, %s172
      %s174 = scalar_select %p173, %s30, %s172
      %s175 = sadd.s32 %s168, %s174
      %s176 = sld [smem:[#allocation3 + %s41]]
      %s177 = sadd.s32 %s41, 1
      %s178 = sld [smem:[#allocation3 + %s177]]
      %s179 = ssub.s32 %s178, %s176
      %s180 = ssub.s32 %s179, 1
      %p181 = scmp.lt.s32.totalorder %s37, %s180
      %s182 = scalar_select %p181, %s37, %s180
      %s183 = sadd.s32 %s176, %s182
      %s184 = ssub.s32 %s175, %s183
      %p185 = scmp.eq.s32.totalorder %s184, 0
      %s187 = sadd.s32 %s186, 1
      %s188 = scalar_select %p185, %s186, %s187
      %p191 = pneg %p185
      %p192 = scmp.eq.s32.totalorder %s22, 5
      %p193 = por %p191, %p192
      %p194 = scmp.ne.s32.totalorder %s186, %s189
      %p195 = scmp.eq.s32.totalorder %s22, 0
      %p196 = por %p194, %p195
      %p197 = scmp.ne.s32.totalorder %s186, %s189
      %p198 = scmp.eq.s32.totalorder %s27, 5
      %p199 = por %p197, %p198
      %p200 = scmp.ne.s32.totalorder %s189, %s190
      %p201 = scmp.eq.s32.totalorder %s27, 0
      %p202 = por %p200, %p201
      %p203 = scmp.ne.s32.totalorder %s189, %s190
      %p204 = scmp.eq.s32.totalorder %s28, 5
      %p205 = por %p203, %p204
      %p207 = scmp.ne.s32.totalorder %s190, %s206
      %p208 = scmp.eq.s32.totalorder %s28, 0
      %p209 = por %p207, %p208
      %s211 = sadd.s32 %s210, 1
      %p214 = scmp.eq.s32.totalorder %s22, 5
      %p215 = scmp.ne.s32.totalorder %s210, %s212
      %p216 = scmp.eq.s32.totalorder %s22, 0
      %p217 = por %p215, %p216
      %p218 = scmp.ne.s32.totalorder %s210, %s212
      %p219 = scmp.eq.s32.totalorder %s27, 5
      %p220 = por %p218, %p219
      %p221 = scmp.ne.s32.totalorder %s212, %s213
      %p222 = scmp.eq.s32.totalorder %s27, 0
      %p223 = por %p221, %p222
      %p224 = scmp.ne.s32.totalorder %s212, %s213
      %p225 = scmp.eq.s32.totalorder %s28, 5
      %p226 = por %p224, %p225
      %p228 = scmp.ne.s32.totalorder %s213, %s227
      %p229 = scmp.eq.s32.totalorder %s28, 0
      %p230 = por %p228, %p229
      %s231 = ssub.s32 %s29, %s41
      %p232 = scmp.eq.s32.totalorder %s231, 0
      %s234 = sadd.s32 %s233, 1
      %s235 = scalar_select %p232, %s233, %s234
      %p238 = pneg %p232
      %p239 = scmp.eq.s32.totalorder %s22, 5
      %p240 = por %p238, %p239
      %p241 = scmp.ne.s32.totalorder %s233, %s236
      %p242 = scmp.eq.s32.totalorder %s22, 0
      %p243 = por %p241, %p242
      %p244 = scmp.ne.s32.totalorder %s233, %s236
      %p245 = scmp.eq.s32.totalorder %s27, 5
      %p246 = por %p244, %p245
      %p247 = scmp.ne.s32.totalorder %s236, %s237
      %p248 = scmp.eq.s32.totalorder %s27, 0
      %p249 = por %p247, %p248
      %p250 = scmp.ne.s32.totalorder %s236, %s237
      %p251 = scmp.eq.s32.totalorder %s28, 5
      %p252 = por %p250, %p251
      %p254 = scmp.ne.s32.totalorder %s237, %s253
      %p255 = scmp.eq.s32.totalorder %s28, 0
      %p256 = por %p254, %p255
      %p257 = scmp.le.s32.totalorder 1, %s22
      %p258 = scmp.lt.s32.totalorder %s22, 7
      %p259 = pnand %p257, %p258
      %p260 = pneg %p259
      // Predicated region
      $region9: #{tpu_custom_call.1} parent=5 // pred_check
        _
      $region10: #{tpu_custom_call.1} parent=5 // pred_check_branch
        %262 = sbr.rel (%p259) target = $region12
      $region11: #{tpu_custom_call.1} parent=5 // pred_region
        %s263 = ssub.s32 %s22, 1
        // Predicated region
        $region13: #{tpu_custom_call.1} parent=11 // pred_check
          %p264 = pneg %p223
        $region14: #{tpu_custom_call.1} parent=11 // pred_check_branch
          %266 = sbr.rel (%p264) target = $region16
        $region15: #{tpu_custom_call.1} parent=11 // pred_region
          %s268 = ssub.s32 2048, 2048
          %269 = vsyncadd [#allocation5], %s268
          %s270 = sshll.u32 [#allocation4], 4
          %s271 = int_to_ptr.vmem [resolvable:$true] %s270
          %276 = dma.hbm_to_vmem [thread:$0]  %s5, 2048, %s271, [#allocation5], 64, 64, 4
        $region16: #{tpu_custom_call.1} parent=11 // pred_fallthru
          _
      $region12: #{tpu_custom_call.1} parent=5 // pred_fallthru
        _
      %p277 = scmp.lt.s32.totalorder %s22, 6
      // Predicated region
      $region17: #{tpu_custom_call.1} parent=5 // pred_check
        %p278 = pneg %p277
      $region18: #{tpu_custom_call.1} parent=5 // pred_check_branch
        %280 = sbr.rel (%p278) target = $region20
      $region19: #{tpu_custom_call.1} parent=5 // pred_region
        // Predicated region
        $region21: #{tpu_custom_call.1} parent=19 // pred_check
          %p281 = pneg %p70
        $region22: #{tpu_custom_call.1} parent=19 // pred_check_branch
          %283 = sbr.rel (%p281) target = $region24
        $region23: #{tpu_custom_call.1} parent=19 // pred_region
          %s284 = sld [smem:[#allocation3 + %s29]]
          %s285 = sadd.s32 %s29, 1
          %s286 = sld [smem:[#allocation3 + %s285]]
          %s287 = ssub.s32 %s286, %s284
          %s288 = ssub.s32 %s287, 1
          %p289 = scmp.lt.s32.totalorder %s30, %s288
          %s290 = scalar_select %p289, %s30, %s288
          %s291 = sadd.s32 %s284, %s290
          %p292 = scmp.lt.s32.totalorder %s291, 5
          %s293 = scalar_select %p292, %s291, 5
          %s294 = smul.addr %s293, 4
          %s295 = scalar_lea.vmem %s1, %s294
          %s296 = sld [smem:[#allocation3 + %s29]]
          %s297 = sadd.s32 %s29, 1
          %s298 = sld [smem:[#allocation3 + %s297]]
          %s299 = ssub.s32 %s298, %s296
          %s300 = ssub.s32 %s299, 1
          %p301 = scmp.lt.s32.totalorder %s30, %s300
          %s302 = scalar_select %p301, %s30, %s300
          %s303 = sadd.s32 %s296, %s302
        $region24: #{tpu_custom_call.1} parent=19 // pred_fallthru
          _
        // Predicated region
        $region25: #{tpu_custom_call.1} parent=19 // pred_check
          %p304 = pneg %p112
        $region26: #{tpu_custom_call.1} parent=19 // pred_check_branch
          %306 = sbr.rel (%p304) target = $region28
        $region27: #{tpu_custom_call.1} parent=19 // pred_region
          %s307 = sld [smem:[#allocation3 + %s29]]
          %s308 = sadd.s32 %s29, 1
          %s309 = sld [smem:[#allocation3 + %s308]]
          %s310 = ssub.s32 %s309, %s307
          %s311 = ssub.s32 %s310, 1
          %p312 = scmp.lt.s32.totalorder %s30, %s311
          %s313 = scalar_select %p312, %s30, %s311
          %s314 = sadd.s32 %s307, %s313
          %p315 = scmp.lt.s32.totalorder %s314, 5
          %s316 = scalar_select %p315, %s314, 5
          %s317 = smul.addr %s316, 8
          %s318 = scalar_lea.vmem %s2, %s317
          %s319 = sld [smem:[#allocation3 + %s29]]
          %s320 = sadd.s32 %s29, 1
          %s321 = sld [smem:[#allocation3 + %s320]]
          %s322 = ssub.s32 %s321, %s319
          %s323 = ssub.s32 %s322, 1
          %p324 = scmp.lt.s32.totalorder %s30, %s323
          %s325 = scalar_select %p324, %s30, %s323
          %s326 = sadd.s32 %s319, %s325
        $region28: #{tpu_custom_call.1} parent=19 // pred_fallthru
          _
        // Predicated region
        $region29: #{tpu_custom_call.1} parent=19 // pred_check
          %p327 = pneg %p154
        $region30: #{tpu_custom_call.1} parent=19 // pred_check_branch
          %329 = sbr.rel (%p327) target = $region32
        $region31: #{tpu_custom_call.1} parent=19 // pred_region
          %s330 = sld [smem:[#allocation3 + %s29]]
          %s331 = sadd.s32 %s29, 1
          %s332 = sld [smem:[#allocation3 + %s331]]
          %s333 = ssub.s32 %s332, %s330
          %s334 = ssub.s32 %s333, 1
          %p335 = scmp.lt.s32.totalorder %s30, %s334
          %s336 = scalar_select %p335, %s30, %s334
          %s337 = sadd.s32 %s330, %s336
          %p338 = scmp.lt.s32.totalorder %s337, 5
          %s339 = scalar_select %p338, %s337, 5
          %s340 = smul.addr %s339, 8
          %s341 = scalar_lea.vmem %s3, %s340
          %s342 = sld [smem:[#allocation3 + %s29]]
          %s343 = sadd.s32 %s29, 1
          %s344 = sld [smem:[#allocation3 + %s343]]
          %s345 = ssub.s32 %s344, %s342
          %s346 = ssub.s32 %s345, 1
          %p347 = scmp.lt.s32.totalorder %s30, %s346
          %s348 = scalar_select %p347, %s30, %s346
          %s349 = sadd.s32 %s342, %s348
        $region32: #{tpu_custom_call.1} parent=19 // pred_fallthru
          _
        // Predicated region
        $region33: #{tpu_custom_call.1} parent=19 // pred_check
          %p350 = pneg %p196
        $region34: #{tpu_custom_call.1} parent=19 // pred_check_branch
          %352 = sbr.rel (%p350) target = $region36
        $region35: #{tpu_custom_call.1} parent=19 // pred_region
          %s353 = sld [smem:[#allocation3 + %s29]]
          %s354 = sadd.s32 %s29, 1
          %s355 = sld [smem:[#allocation3 + %s354]]
          %s356 = ssub.s32 %s355, %s353
          %s357 = ssub.s32 %s356, 1
          %p358 = scmp.lt.s32.totalorder %s30, %s357
          %s359 = scalar_select %p358, %s30, %s357
          %s360 = sadd.s32 %s353, %s359
          %p361 = scmp.lt.s32.totalorder %s360, 5
          %s362 = scalar_select %p361, %s360, 5
          %s363 = scalar_lea.vmem %s4, %s362
          %s364 = sld [smem:[#allocation3 + %s29]]
          %s365 = sadd.s32 %s29, 1
          %s366 = sld [smem:[#allocation3 + %s365]]
          %s367 = ssub.s32 %s366, %s364
          %s368 = ssub.s32 %s367, 1
          %p369 = scmp.lt.s32.totalorder %s30, %s368
          %s370 = scalar_select %p369, %s30, %s368
          %s371 = sadd.s32 %s364, %s370
        $region36: #{tpu_custom_call.1} parent=19 // pred_fallthru
          _
      $region20: #{tpu_custom_call.1} parent=5 // pred_fallthru
        _
      %p372 = scmp.le.s32.totalorder 1, %s22
      %p373 = scmp.lt.s32.totalorder %s22, 7
      %p374 = pnand %p372, %p373
      %p375 = pneg %p374
      // Predicated region
      $region37: #{tpu_custom_call.1} parent=5 // pred_check
        _
      $region38: #{tpu_custom_call.1} parent=5 // pred_check_branch
        %377 = sbr.rel (%p374) target = $region40
      $region39: #{tpu_custom_call.1} parent=5 // pred_region
        %s378 = ssub.s32 %s22, 1
        // Predicated region
        $region41: #{tpu_custom_call.1} parent=39 // pred_check
          %p379 = pneg %p223
        $region42: #{tpu_custom_call.1} parent=39 // pred_check_branch
          %381 = sbr.rel (%p379) target = $region44
        $region43: #{tpu_custom_call.1} parent=39 // pred_region
          %382 = dma.done [#allocation5], 2048
        $region44: #{tpu_custom_call.1} parent=39 // pred_fallthru
          _
        %s383 = sld [smem:[#allocation3 + %s31]]
        %s384 = sadd.s32 %s31, 1
        %s385 = sld [smem:[#allocation3 + %s384]]
        %s386 = ssub.s32 %s385, %s383
        %s387 = ssub.s32 %s386, 1
        %p388 = scmp.lt.s32.totalorder %s32, %s387
        %s389 = scalar_select %p388, %s32, %s387
        %s390 = sadd.s32 %s383, %s389
        %p391 = scmp.lt.s32.totalorder %s390, 5
        %s392 = scalar_select %p391, %s390, 5
        %s393 = smul.addr %s392, 4
        %s394 = scalar_lea.vmem %s1, %s393
        %p395 = pneg %p76
        %p396 = pneg %p73
        %s397 = sld [smem:[#allocation3 + %s31]]
        %s398 = sadd.s32 %s31, 1
        %s399 = sld [smem:[#allocation3 + %s398]]
        %s400 = ssub.s32 %s399, %s397
        %s401 = ssub.s32 %s400, 1
        %p402 = scmp.lt.s32.totalorder %s32, %s401
        %s403 = scalar_select %p402, %s32, %s401
        %s404 = sadd.s32 %s397, %s403
        %p405 = scmp.lt.s32.totalorder %s404, 5
        %s406 = scalar_select %p405, %s404, 5
        %s407 = smul.addr %s406, 8
        %s408 = scalar_lea.vmem %s2, %s407
        %p409 = pneg %p118
        %p410 = pneg %p115
        %s411 = sld [smem:[#allocation3 + %s31]]
        %s412 = sadd.s32 %s31, 1
        %s413 = sld [smem:[#allocation3 + %s412]]
        %s414 = ssub.s32 %s413, %s411
        %s415 = ssub.s32 %s414, 1
        %p416 = scmp.lt.s32.totalorder %s32, %s415
        %s417 = scalar_select %p416, %s32, %s415
        %s418 = sadd.s32 %s411, %s417
        %p419 = scmp.lt.s32.totalorder %s418, 5
        %s420 = scalar_select %p419, %s418, 5
        %s421 = smul.addr %s420, 8
        %s422 = scalar_lea.vmem %s3, %s421
        %p423 = pneg %p160
        %p424 = pneg %p157
        %s425 = sld [smem:[#allocation3 + %s31]]
        %s426 = sadd.s32 %s31, 1
        %s427 = sld [smem:[#allocation3 + %s426]]
        %s428 = ssub.s32 %s427, %s425
        %s429 = ssub.s32 %s428, 1
        %p430 = scmp.lt.s32.totalorder %s32, %s429
        %s431 = scalar_select %p430, %s32, %s429
        %s432 = sadd.s32 %s425, %s431
        %p433 = scmp.lt.s32.totalorder %s432, 5
        %s434 = scalar_select %p433, %s432, 5
        %s435 = scalar_lea.vmem %s4, %s434
        %p436 = pneg %p202
        %p437 = pneg %p199
        %p438 = pneg %p223
        %p439 = pneg %p220
        %p440 = pneg %p249
        %p441 = pneg %p246
        %s442 = sand.u32 %s236, 1
        %s443 = scalar_lea.sflag [#allocation6], %s442
        %s444 = sand.u32 %s236, 1
        %s445 = smul.addr %s444, 8
        %s446 = scalar_lea.vmem [#allocation7], %s445
        %s447 = sld [smem:[#allocation3 + %s31]]
        %s448 = sadd.s32 %s31, 1
        %s449 = sld [smem:[#allocation3 + %s448]]
        %s450 = ssub.s32 %s449, %s447
        %s451 = ssub.s32 %s450, 1
        %p452 = scmp.lt.s32.totalorder %s32, %s451
        %s453 = scalar_select %p452, %s32, %s451
        %s454 = sadd.s32 %s447, %s453
        %p455 = scmp.lt.s32.totalorder %s454, 5
        %s456 = scalar_select %p455, %s454, 5
        %s457 = smul.addr %s456, 4
        %s458 = scalar_lea.vmem %s1, %s457
        %s459 = sld [smem:[#allocation3 + %s31]]
        %s460 = sadd.s32 %s31, 1
        %s461 = sld [smem:[#allocation3 + %s460]]
        %s462 = ssub.s32 %s461, %s459
        %s463 = ssub.s32 %s462, 1
        %p464 = scmp.lt.s32.totalorder %s32, %s463
        %s465 = scalar_select %p464, %s32, %s463
        %s466 = sadd.s32 %s459, %s465
        %s467 = sld [smem:[#allocation3 + %s31]]
        %s468 = sadd.s32 %s31, 1
        %s469 = sld [smem:[#allocation3 + %s468]]
        %s470 = ssub.s32 %s469, %s467
        %s471 = ssub.s32 %s470, 1
        %p472 = scmp.lt.s32.totalorder %s32, %s471
        %s473 = scalar_select %p472, %s32, %s471
        %s474 = sadd.s32 %s467, %s473
        %p475 = scmp.lt.s32.totalorder %s474, 5
        %s476 = scalar_select %p475, %s474, 5
        %s477 = smul.addr %s476, 8
        %s478 = scalar_lea.vmem %s2, %s477
        %s479 = sld [smem:[#allocation3 + %s31]]
        %s480 = sadd.s32 %s31, 1
        %s481 = sld [smem:[#allocation3 + %s480]]
        %s482 = ssub.s32 %s481, %s479
        %s483 = ssub.s32 %s482, 1
        %p484 = scmp.lt.s32.totalorder %s32, %s483
        %s485 = scalar_select %p484, %s32, %s483
        %s486 = sadd.s32 %s479, %s485
        %s487 = sld [smem:[#allocation3 + %s31]]
        %s488 = sadd.s32 %s31, 1
        %s489 = sld [smem:[#allocation3 + %s488]]
        %s490 = ssub.s32 %s489, %s487
        %s491 = ssub.s32 %s490, 1
        %p492 = scmp.lt.s32.totalorder %s32, %s491
        %s493 = scalar_select %p492, %s32, %s491
        %s494 = sadd.s32 %s487, %s493
        %p495 = scmp.lt.s32.totalorder %s494, 5
        %s496 = scalar_select %p495, %s494, 5
        %s497 = smul.addr %s496, 8
        %s498 = scalar_lea.vmem %s3, %s497
        %s499 = sld [smem:[#allocation3 + %s31]]
        %s500 = sadd.s32 %s31, 1
        %s501 = sld [smem:[#allocation3 + %s500]]
        %s502 = ssub.s32 %s501, %s499
        %s503 = ssub.s32 %s502, 1
        %p504 = scmp.lt.s32.totalorder %s32, %s503
        %s505 = scalar_select %p504, %s32, %s503
        %s506 = sadd.s32 %s499, %s505
        %s507 = sld [smem:[#allocation3 + %s31]]
        %s508 = sadd.s32 %s31, 1
        %s509 = sld [smem:[#allocation3 + %s508]]
        %s510 = ssub.s32 %s509, %s507
        %s511 = ssub.s32 %s510, 1
        %p512 = scmp.lt.s32.totalorder %s32, %s511
        %s513 = scalar_select %p512, %s32, %s511
        %s514 = sadd.s32 %s507, %s513
        %p515 = scmp.lt.s32.totalorder %s514, 5
        %s516 = scalar_select %p515, %s514, 5
        %s517 = scalar_lea.vmem %s4, %s516
        %s518 = sld [smem:[#allocation3 + %s31]]
        %s519 = sadd.s32 %s31, 1
        %s520 = sld [smem:[#allocation3 + %s519]]
        %s521 = ssub.s32 %s520, %s518
        %s522 = ssub.s32 %s521, 1
        %p523 = scmp.lt.s32.totalorder %s32, %s522
        %s524 = scalar_select %p523, %s32, %s522
        %s525 = sadd.s32 %s518, %s524
        %p527 = scmp.eq.s32.totalorder %s32, 0
        // Predicated region
        $region45: #{tpu_custom_call.1} parent=39 // pred_check
          %p528 = pneg %p527
        $region46: #{tpu_custom_call.1} parent=39 // pred_check_branch
          %530 = sbr.rel (%p528) target = $region48
        $region47: #{tpu_custom_call.1} parent=39 // pred_region
          %531 = vst [vmem:[%s446] sm:$0xff] 0.0
        $region48: #{tpu_custom_call.1} parent=39 // pred_fallthru
          _
        %s532 = sadd.s32 %s31, 1
        %s533 = sld [smem:[#allocation3 + %s532]]
        %s534 = sld [smem:[#allocation3 + %s31]]
        %s535 = ssub.s32 %s533, %s534
        %p536 = scmp.lt.s32.totalorder %s32, %s535
        // Predicated region
        $region49: #{tpu_custom_call.1} parent=39 // pred_check
          %p537 = pneg %p536
        $region50: #{tpu_custom_call.1} parent=39 // pred_check_branch
          %539 = sbr.rel (%p537) target = $region52
        $region51: #{tpu_custom_call.1} parent=39 // pred_region
          %v540 = vld [vmem:[%s458] sm:$0xf]
          %v541 = vunpack.c.l.bf16 %v540
          %v542 = vld [vmem:[%s478] sm:$0xff]
          %v543 = vld [vmem:[%s498] sm:$0xff]
          %v544 = vmul.f32 %v542, %v543
          %v545 = vsub.f32 %v542, %v544
          %547 = vset.pattern.permute.xlu0 0
          %548 = vperm.xlu0 %547, %v545
          %v549 = vpop.permute.xlu0 %548
          %v551 = vmul.f32 %v549, %v541
          %553 = vset.pattern.permute.xlu0 0
          %554 = vperm.xlu0 %553, %v544
          %v555 = vpop.permute.xlu0 %554
          %v557 = vmul.f32 %v555, %v541
          %v558 = vpack.c.bf16 %v551, %v551
          %v559 = vpack.c.bf16 %v557, %v557
          %v560 = vld [vmem:[#allocation4] sm:$0xf]
          %v561 = vld [vmem:[#allocation4 + $0x4] sm:$0xf]
          %v562 = vld [vmem:[#allocation4 + $0x8] sm:$0xf]
          %v563 = vld [vmem:[#allocation4 + $0xc] sm:$0xf]
          %v564 = vld [vmem:[#allocation4 + $0x10] sm:$0xf]
          %v565 = vld [vmem:[#allocation4 + $0x14] sm:$0xf]
          %v566 = vld [vmem:[#allocation4 + $0x18] sm:$0xf]
          %v567 = vld [vmem:[#allocation4 + $0x1c] sm:$0xf]
          %v568 = vld [vmem:[#allocation4 + $0x20] sm:$0xf]
          %v569 = vld [vmem:[#allocation4 + $0x24] sm:$0xf]
          %v570 = vld [vmem:[#allocation4 + $0x28] sm:$0xf]
          %v571 = vld [vmem:[#allocation4 + $0x2c] sm:$0xf]
          %v572 = vld [vmem:[#allocation4 + $0x30] sm:$0xf]
          %v573 = vld [vmem:[#allocation4 + $0x34] sm:$0xf]
          %v574 = vld [vmem:[#allocation4 + $0x38] sm:$0xf]
          %v575 = vld [vmem:[#allocation4 + $0x3c] sm:$0xf]
          %v576 = vld [vmem:[#allocation4 + $0x40] sm:$0xf]
          %v577 = vld [vmem:[#allocation4 + $0x44] sm:$0xf]
          %v578 = vld [vmem:[#allocation4 + $0x48] sm:$0xf]
          %v579 = vld [vmem:[#allocation4 + $0x4c] sm:$0xf]
          %v580 = vld [vmem:[#allocation4 + $0x50] sm:$0xf]
          %v581 = vld [vmem:[#allocation4 + $0x54] sm:$0xf]
          %v582 = vld [vmem:[#allocation4 + $0x58] sm:$0xf]
          %v583 = vld [vmem:[#allocation4 + $0x5c] sm:$0xf]
          %v584 = vld [vmem:[#allocation4 + $0x60] sm:$0xf]
          %v585 = vld [vmem:[#allocation4 + $0x64] sm:$0xf]
          %v586 = vld [vmem:[#allocation4 + $0x68] sm:$0xf]
          %v587 = vld [vmem:[#allocation4 + $0x6c] sm:$0xf]
          %v588 = vld [vmem:[#allocation4 + $0x70] sm:$0xf]
          %v589 = vld [vmem:[#allocation4 + $0x74] sm:$0xf]
          %v590 = vld [vmem:[#allocation4 + $0x78] sm:$0xf]
          %v591 = vld [vmem:[#allocation4 + $0x7c] sm:$0xf]
          %v624 = vunpack.c.l.b16 %v560
          %v625 = vunpack.c.l.b16 %v561
          %v626 = vunpack.c.l.b16 %v562
          %v627 = vunpack.c.l.b16 %v563
          %v628 = vunpack.c.l.b16 %v564
          %v629 = vunpack.c.l.b16 %v565
          %v630 = vunpack.c.l.b16 %v566
          %v631 = vunpack.c.l.b16 %v567
          %v632 = vunpack.c.l.b16 %v568
          %v633 = vunpack.c.l.b16 %v569
          %v634 = vunpack.c.l.b16 %v570
          %v635 = vunpack.c.l.b16 %v571
          %v636 = vunpack.c.l.b16 %v572
          %v637 = vunpack.c.l.b16 %v573
          %v638 = vunpack.c.l.b16 %v574
          %v639 = vunpack.c.l.b16 %v575
          %v640 = vunpack.c.l.b16 %v576
          %v641 = vunpack.c.l.b16 %v577
          %v642 = vunpack.c.l.b16 %v578
          %v643 = vunpack.c.l.b16 %v579
          %v644 = vunpack.c.l.b16 %v580
          %v645 = vunpack.c.l.b16 %v581
          %v646 = vunpack.c.l.b16 %v582
          %v647 = vunpack.c.l.b16 %v583
          %v648 = vunpack.c.l.b16 %v584
          %v649 = vunpack.c.l.b16 %v585
          %v650 = vunpack.c.l.b16 %v586
          %v651 = vunpack.c.l.b16 %v587
          %v652 = vunpack.c.l.b16 %v588
          %v653 = vunpack.c.l.b16 %v589
          %v654 = vunpack.c.l.b16 %v590
          %v655 = vunpack.c.l.b16 %v591
          %v656 = vpack.c.b16 %v625, %v624
          %v657 = vpack.c.b16 %v627, %v626
          %v658 = vpack.c.b16 %v629, %v628
          %v659 = vpack.c.b16 %v631, %v630
          %v660 = vpack.c.b16 %v633, %v632
          %v661 = vpack.c.b16 %v635, %v634
          %v662 = vpack.c.b16 %v637, %v636
          %v663 = vpack.c.b16 %v639, %v638
          %v664 = vpack.c.b16 %v641, %v640
          %v665 = vpack.c.b16 %v643, %v642
          %v666 = vpack.c.b16 %v645, %v644
          %v667 = vpack.c.b16 %v647, %v646
          %v668 = vpack.c.b16 %v649, %v648
          %v669 = vpack.c.b16 %v651, %v650
          %v670 = vpack.c.b16 %v653, %v652
          %v671 = vpack.c.b16 %v655, %v654
          %688 = vmatprep.subr.bf16.mxu0 0
          %689 = vmatpush1.bf16.msra.mxu0 %v656
          %690 = vmatprep.subr.bf16.mxu0 0
          %691 = vmatpush1.bf16.msra.mxu0 %v657
          %692 = vmatprep.subr.bf16.mxu0 0
          %693 = vmatpush1.bf16.msra.mxu0 %v658
          %694 = vmatprep.subr.bf16.mxu0 0
          %695 = vmatpush1.bf16.msra.mxu0 %v659
          %696 = vmatprep.subr.bf16.mxu0 0
          %697 = vmatpush1.bf16.msra.mxu0 %v660
          %698 = vmatprep.subr.bf16.mxu0 0
          %699 = vmatpush1.bf16.msra.mxu0 %v661
          %700 = vmatprep.subr.bf16.mxu0 0
          %701 = vmatpush1.bf16.msra.mxu0 %v662
          %702 = vmatprep.subr.bf16.mxu0 0
          %703 = vmatpush1.bf16.msra.mxu0 %v663
          %704 = vmatprep.subr.bf16.mxu0 0
          %705 = vmatpush1.bf16.msra.mxu0 %v664
          %706 = vmatprep.subr.bf16.mxu0 0
          %707 = vmatpush1.bf16.msra.mxu0 %v665
          %708 = vmatprep.subr.bf16.mxu0 0
          %709 = vmatpush1.bf16.msra.mxu0 %v666
          %710 = vmatprep.subr.bf16.mxu0 0
          %711 = vmatpush1.bf16.msra.mxu0 %v667
          %712 = vmatprep.subr.bf16.mxu0 0
          %713 = vmatpush1.bf16.msra.mxu0 %v668
          %714 = vmatprep.subr.bf16.mxu0 0
          %715 = vmatpush1.bf16.msra.mxu0 %v669
          %716 = vmatprep.subr.bf16.mxu0 0
          %717 = vmatpush1.bf16.msra.mxu0 %v670
          %718 = vmatprep.subr.bf16.mxu0 0
          %719 = vmatpush1.bf16.msra.mxu0 %v671
          %720 = vmatprep.mubr.bf16.mxu0 %v559
          %721 = vmatmul.mubr.bf16.gmra.mrb[0].mxu0 %v558
          %v722 = vpop.f32.mrb[0].mxu0
          %v723 = vadd.f32 0.0, %v722
          %v724 = vpop.f32.mrb[0].mxu0
          %v725 = vpop.f32.mrb[0].mxu0
          %v726 = vpop.f32.mrb[0].mxu0
          %727 = vdwg.mxu0
          %v728 = vlaneseq
          %v729 = vshrl.u32 %v728, 7
          %v730 = vld [vmem:[%s517] sm:$0x1]
          %v731 = vlaneseq
          %v732 = vshrl.u32 %v731, 7
          %v733 = vsub.s32 0, %v732
          %v734 = vrot.slane %v730, %v733
          %vm735 = vcmp.eq.s32.totalorder %v734, %v729
          %v736 = vsel %vm735, 1, 0
          %v737 = vcvt.s32.f32 %v736
          %v738 = vpack.c.bf16 %v737, %v737
          %v739 = vld [vmem:[%s446] sm:$0xff]
          %v740 = vpack.c.bf16 %v723, %v723
          %vm741 = vcmask 64512
          %v743 = vsel %vm741, %v738, 0
          %vm745 = vcmask 1043456
          %v747 = vsel %vm745, %v740, 0
          %749 = vmatprep.subr.bf16.mxu0 0
          %750 = vmatpush1.bf16.msra.mxu0 %v747
          %751 = vmatprep.subr.bf16.mxu0 0
          %752 = vmatpush1.bf16.msra.mxu0 0
          %753 = vmatprep.subr.bf16.mxu0 0
          %754 = vmatpush1.bf16.msra.mxu0 0
          %755 = vmatprep.subr.bf16.mxu0 0
          %756 = vmatpush1.bf16.msra.mxu0 0
          %757 = vmatprep.subr.bf16.mxu0 0
          %758 = vmatpush1.bf16.msra.mxu0 0
          %759 = vmatprep.subr.bf16.mxu0 0
          %760 = vmatpush1.bf16.msra.mxu0 0
          %761 = vmatprep.subr.bf16.mxu0 0
          %762 = vmatpush1.bf16.msra.mxu0 0
          %763 = vmatprep.subr.bf16.mxu0 0
          %764 = vmatpush1.bf16.msra.mxu0 0
          %765 = vmatprep.subr.bf16.mxu0 0
          %766 = vmatpush1.bf16.msra.mxu0 0
          %767 = vmatprep.subr.bf16.mxu0 0
          %768 = vmatpush1.bf16.msra.mxu0 0
          %769 = vmatprep.subr.bf16.mxu0 0
          %770 = vmatpush1.bf16.msra.mxu0 0
          %771 = vmatprep.subr.bf16.mxu0 0
          %772 = vmatpush1.bf16.msra.mxu0 0
          %773 = vmatprep.subr.bf16.mxu0 0
          %774 = vmatpush1.bf16.msra.mxu0 0
          %775 = vmatprep.subr.bf16.mxu0 0
          %776 = vmatpush1.bf16.msra.mxu0 0
          %777 = vmatprep.subr.bf16.mxu0 0
          %778 = vmatpush1.bf16.msra.mxu0 0
          %779 = vmatprep.subr.bf16.mxu0 0
          %780 = vmatpush1.bf16.msra.mxu0 0
          %781 = vmatprep.mubr.bf16.mxu0 0
          %782 = vmatmul.mubr.bf16.gmra.mrb[0].mxu0 %v743
          %v783 = vpop.f32.mrb[0].mxu0
          %v784 = vadd.f32 0.0, %v783
          %v785 = vpop.f32.mrb[0].mxu0
          %v786 = vpop.f32.mrb[0].mxu0
          %v787 = vpop.f32.mrb[0].mxu0
          %788 = vdwg.mxu0
          %v789 = vadd.f32 %v739, %v784
          %790 = vst [vmem:[%s446] sm:$0xff] %v789
        $region52: #{tpu_custom_call.1} parent=39 // pred_fallthru
          _
        %p791 = scmp.eq.s32.totalorder %s32, 2
        // Predicated region
        $region53: #{tpu_custom_call.1} parent=39 // pred_check
          %p792 = pneg %p791
        $region54: #{tpu_custom_call.1} parent=39 // pred_check_branch
          %794 = sbr.rel (%p792) target = $region56
        $region55: #{tpu_custom_call.1} parent=39 // pred_region
          %v795 = vld [vmem:[%s446] sm:$0xff]
          %v796 = vtanh.pop %v795
          %797 = vst [vmem:[%s446] sm:$0xff] %v796
        $region56: #{tpu_custom_call.1} parent=39 // pred_fallthru
          _
        %s798 = sand.u32 %s236, 1
        %s799 = scalar_lea.sflag [#allocation6], %s798
        %s800 = sand.u32 %s236, 1
        %s801 = smul.addr %s800, 8
        %s802 = scalar_lea.vmem [#allocation7], %s801
        // Predicated region
        $region57: #{tpu_custom_call.1} parent=39 // pred_check
          %p803 = pneg %p246
        $region58: #{tpu_custom_call.1} parent=39 // pred_check_branch
          %805 = sbr.rel (%p803) target = $region60
        $region59: #{tpu_custom_call.1} parent=39 // pred_region
          %s807 = ssub.s32 128, 128
          %808 = vsyncadd %s799, %s807
          %s809 = smul.addr %s31, 128
          %s810 = scalar_lea.hbm %s6, %s809
          %s812 = sshll.u32 %s802, 4
          %s813 = int_to_ptr.vmem [resolvable:$true] %s812
          %815 = dma.vmem_to_hbm [thread:$0]  %s813, 128, %s810, %s799
        $region60: #{tpu_custom_call.1} parent=39 // pred_fallthru
          _
      $region40: #{tpu_custom_call.1} parent=5 // pred_fallthru
        _
      %p816 = scmp.le.s32.totalorder 2, %s22
      // Predicated region
      $region61: #{tpu_custom_call.1} parent=5 // pred_check
        %p817 = pneg %p816
      $region62: #{tpu_custom_call.1} parent=5 // pred_check_branch
        %819 = sbr.rel (%p817) target = $region64
      $region63: #{tpu_custom_call.1} parent=5 // pred_region
        %s820 = ssub.s32 %s22, 2
        // Predicated region
        $region65: #{tpu_custom_call.1} parent=63 // pred_check
          %p821 = pneg %p252
        $region66: #{tpu_custom_call.1} parent=63 // pred_check_branch
          %823 = sbr.rel (%p821) target = $region68
        $region67: #{tpu_custom_call.1} parent=63 // pred_region
          %s824 = sand.u32 %s237, 1
          %s825 = scalar_lea.sflag [#allocation6], %s824
          %s826 = sand.u32 %s237, 1
          %s827 = smul.addr %s826, 8
          %s828 = scalar_lea.vmem [#allocation7], %s827
          %829 = dma.done %s825, 128
        $region68: #{tpu_custom_call.1} parent=63 // pred_fallthru
          _
      $region64: #{tpu_custom_call.1} parent=5 // pred_fallthru
        _
    $region6: #{tpu_custom_call.1} parent=1 // loop_footer
      %s26 = sadd.s32 1, %s22
    $region7: #{tpu_custom_call.1} parent=1 // loop_footer_branch
      %21 = sbr.rel target = $region3
    $region8: #{tpu_custom_call.1} parent=1 // loop_exit
      _
    %830 = vsyncpa [#allocation5], 1
    %s831 = scalar_lea.sflag [#allocation5], 1
    %832 = vsyncpa %s831, 1
    %833 = vsyncpa [#allocation6], 1
    %s834 = scalar_lea.sflag [#allocation6], 1
    %835 = vsyncpa %s834, 1

</llo_original>
